<compile_context>
chip_gen: v7x
topology: tpu7x:2x2x1
jax: 0.10.0
libtpu: 0.0.40
codegen_flags: <defaults>
</compile_context>

<pallas_src>
import functools

import jax
import jax.numpy as jnp
from jax.experimental import pallas as pl
from jax.experimental.pallas import tpu as pltpu


def _round_up(x, m):
    return ((x + m - 1) // m) * m


def _causal_conv1d_kernel(*refs, kernel_size, dilation, c_in, out_w,
                          has_halo, use_mxu, mxu_bf16):
    if has_halo:
        x_ref, h_ref, w_ref, b_ref, o_ref = refs
    else:
        x_ref, w_ref, b_ref, o_ref = refs

    x = x_ref[0]                                      # (C_in, T_blk)
    if has_halo:
        # Lane-aligned append of the small halo block (tt % hb == 0 by construction).
        x = jnp.concatenate([x, h_ref[0]], axis=-1)   # (C_in, T_blk + hb)

    if use_mxu:
        if mxu_bf16:
            x = x.astype(jnp.bfloat16)                # bf16 MXU operands, f32 acc
        # im2col: stack the K dilated tap windows along the contraction (sublane) axis.
        taps = [x[:, kk * dilation: kk * dilation + out_w]
                for kk in range(kernel_size)]
        x2 = taps[0] if kernel_size == 1 else jnp.concatenate(taps, axis=0)
        # One fused MXU matmul with contraction K*C_in (no per-tap accumulation).
        acc = jnp.dot(w_ref[...], x2, preferred_element_type=jnp.float32)
        acc = acc + b_ref[...]                        # (C_out, 1) bcast over lanes
    else:
        # VPU path for tiny K*C_in: broadcast-column FMAs over the (C_out, TT) tile,
        # no im2col / no MXU push (MXU fill would be single-digit % here).
        w = w_ref[...]                                # (C_out, K*C_in) -- tiny
        c_out = w.shape[0]
        acc = jnp.broadcast_to(b_ref[...], (c_out, out_w)).astype(jnp.float32)
        for kk in range(kernel_size):
            xs = x[:, kk * dilation: kk * dilation + out_w]      # (C_in, out_w)
            for c in range(c_in):
                col = w[:, kk * c_in + c: kk * c_in + c + 1]     # (C_out, 1)
                acc = acc + col * xs[c:c + 1, :]                 # outer-product FMA

    o_ref[0] = acc.astype(o_ref.dtype)


def causal_conv1d(x, weight, bias=None, *, dilation=1, time_tile=2048,
                  mxu_bf16=False, vpu_max_contraction=32,
                  vmem_budget_bytes=24 * 1024 * 1024):
    """Causal dilated conv1d, semantics of nn.Conv1d(padding=0, dilation=d).

    x:      (B, C_in, T)      (PyTorch NCT layout -- no activation transposes)
    weight: (C_out, C_in, K)  (PyTorch Conv1d weight layout)
    bias:   (C_out,) or None
    returns (B, C_out, T - dilation*(K-1)), same dtype as x.
    """
    b, c_in, t = x.shape
    c_out, c_in_w, k = weight.shape
    assert c_in_w == c_in
    halo = dilation * (k - 1)
    t_out = t - halo
    assert t_out > 0, "input too short for this kernel_size/dilation"
    if bias is None:
        bias = jnp.zeros((c_out,), weight.dtype)

    # ---- path selection (VPU for tiny contractions, MXU otherwise) -------------
    use_mxu = (k * c_in) > vpu_max_contraction
    use_bf16 = bool(mxu_bf16) and use_mxu and (c_in % 16 == 0)   # bf16 sublane tile

    # ---- channel padding: ONLY for the MXU im2col path with ragged C_in --------
    c_in_p = c_in
    if use_mxu:
        mult = 16 if use_bf16 else 8
        c_in_p = _round_up(c_in, mult)
    if c_in_p != c_in:
        # Rare (large-but-unaligned C_in); costs one activation copy, keeps the
        # in-kernel sublane concatenation tile-aligned.
        x = jnp.pad(x, ((0, 0), (0, c_in_p - c_in), (0, 0)))
        weight = jnp.pad(weight, ((0, 0), (0, c_in_p - c_in), (0, 0)))

    # ---- weight repack (tiny, weight-only): w2[o, kk*C_in + c] = weight[o, c, kk]
    w2 = jnp.transpose(weight, (0, 2, 1)).reshape(c_out, k * c_in_p)
    if use_bf16:
        w2 = w2.astype(jnp.bfloat16)
    b2 = bias.reshape(c_out, 1).astype(jnp.float32)

    # ---- time tiling (no padding of the time axis, exact output shape) ---------
    esz = x.dtype.itemsize
    csz = 2 if use_bf16 else esz

    def _vmem_est(in_w, halo_w, out_w):
        bufs = 2 * c_in_p * (in_w + halo_w) * esz          # double-buffered inputs
        outb = 2 * c_out * out_w * esz                      # double-buffered output
        wb = c_out * k * c_in_p * csz + c_out * 4
        tmp = (k + 1) * c_in_p * out_w * csz if use_mxu else 0   # im2col + concat
        return bufs + outb + wb + tmp + c_out * out_w * 4        # + f32 accumulator

    hb = 0
    single = (t_out <= time_tile) and (_vmem_est(t, 0, t_out) <= vmem_budget_bytes)
    if not single:
        tt = _round_up(min(time_tile, t_out), 128)
        if halo > 0:
            hb = _round_up(halo, 128)
            tt = _round_up(tt, hb)          # halo block index divides evenly
        step = hb if hb else 128
        # VMEM-aware shrink (matters for large channel counts / v7x 64 MiB VMEM).
        while tt > max(2 * step, 256) and _vmem_est(tt, hb, tt) > vmem_budget_bytes:
            tt = _round_up(max(tt // 2, step), step)
        if tt >= t_out:                     # tiling degenerated to one tile
            single, hb = True, 0

    if single:
        tt, x_blk_w, has_halo, n_t = t_out, t, False, 1   # full-dim blocks, no halo view
    else:
        x_blk_w, has_halo, n_t = tt, halo > 0, pl.cdiv(t_out, tt)

    kern = functools.partial(
        _causal_conv1d_kernel, kernel_size=k, dilation=dilation, c_in=c_in_p,
        out_w=tt, has_halo=has_halo, use_mxu=use_mxu, mxu_bf16=use_bf16)

    # ---- specs ------------------------------------------------------------------
    in_specs = [pl.BlockSpec((1, c_in_p, x_blk_w), lambda bi, ti: (bi, 0, ti))]
    operands = [x]
    if has_halo:
        ratio = tt // hb
        max_hblk = (t - 1) // hb            # keep the halo block start in bounds;
        #                                     when it would start past T the halo is
        #                                     provably unused (main block covers it).
        in_specs.append(pl.BlockSpec(
            (1, c_in_p, hb),
            lambda bi, ti: (bi, 0, jnp.minimum((ti + 1) * ratio, max_hblk))))
        operands.append(x)                  # second, small view of the same array
    in_specs += [pl.BlockSpec((c_out, k * c_in_p), lambda bi, ti: (0, 0)),
                 pl.BlockSpec((c_out, 1), lambda bi, ti: (0, 0))]
    operands += [w2, b2]

    out = pl.pallas_call(
        kern,
        out_shape=jax.ShapeDtypeStruct((b, c_out, t_out), x.dtype),
        grid_spec=pltpu.PrefetchScalarGridSpec(
            num_scalar_prefetch=0,
            grid=(b, n_t),
            in_specs=in_specs,
            out_specs=pl.BlockSpec((1, c_out, tt), lambda bi, ti: (bi, 0, ti)),
        ),
        compiler_params=pltpu.CompilerParams(
            dimension_semantics=("parallel", "parallel"),
            vmem_limit_bytes=48 * 1024 * 1024),
    )(*operands)
    return out


# ------------------------------- verification ------------------------------------
def _reference_conv1d(x, weight, bias, dilation):
    out = jax.lax.conv_general_dilated(
        x, weight, window_strides=(1,), padding="VALID",
        rhs_dilation=(dilation,), dimension_numbers=("NCH", "OIH", "NCH"),
        precision=jax.lax.Precision.HIGHEST)
    return out + bias[None, :, None]


def _run_case(key, *, b, c_in, c_out, t, ksz, dil, tol=1e-4, **conv_kwargs):
    kx, kwt, kb = jax.random.split(key, 3)
    fan_in = c_in * ksz
    bound = 1.0 / (fan_in ** 0.5)
    weight = jax.random.uniform(kwt, (c_out, c_in, ksz), minval=-bound,
                                maxval=bound, dtype=jnp.float32)
    bias = jax.random.uniform(kb, (c_out,), minval=-bound, maxval=bound,
                              dtype=jnp.float32)
    x = jax.random.normal(kx, (b, c_in, t), dtype=jnp.float32)

    out = jax.block_until_ready(
        causal_conv1d(x, weight, bias, dilation=dil, **conv_kwargs))
    ref = _reference_conv1d(x, weight, bias, dil)

    t_out = t - dil * (ksz - 1)
    assert out.shape == (b, c_out, t_out), (out.shape, (b, c_out, t_out))
    err = float(jnp.max(jnp.abs(out - ref)))
    assert err <= tol, f"max abs err {err} > {tol}"


if __name__ == "__main__":
    root = jax.random.PRNGKey(0)
    keys = jax.random.split(root, 6)
    # 1) module-sized shape (B, C, T) = (2, 4, 16): single tile, VPU path, no pads.
    _run_case(keys[0], b=2, c_in=4, c_out=6, t=16, ksz=3, dil=2)
    # 2) ragged channels, k=2, larger dilation: still VPU, no padding anywhere.
    _run_case(keys[1], b=2, c_in=5, c_out=7, t=300, ksz=2, dil=4)
    # 3) pointwise conv (k=1): no halo machinery at all.
    _run_case(keys[2], b=2, c_in=4, c_out=4, t=64, ksz=1, dil=1)
    # 4) larger channels: single-tile fused im2col MXU path (f32 operands).
    _run_case(keys[3], b=2, c_in=32, c_out=32, t=300, ksz=3, dil=2)
    # 5) long sequence: time-tiled grid, halo side-view, ragged last tile (VPU).
    _run_case(keys[4], b=2, c_in=4, c_out=6, t=4400, ksz=3, dil=2, time_tile=2048)
    # 6) long sequence, MXU path with bf16 operands (v6e/v7x fast path), tiled.
    _run_case(keys[5], b=1, c_in=16, c_out=24, t=3000, ksz=3, dil=1,
              time_tile=1024, mxu_bf16=True, tol=5e-2)
    print("KERNEL_OK")
</pallas_src>

<mosaic_0001>
module attributes {stable_mosaic.version = 11 : i64} {
  func.func @_causal_conv1d_kernel(%arg0: i32, %arg1: i32, %arg2: memref<1x4x16xf32, #tpu.memory_space<vmem>>, %arg3: memref<6x12xf32, #tpu.memory_space<vmem>>, %arg4: memref<6x1xf32, #tpu.memory_space<vmem>>, %arg5: memref<1x6x12xf32, #tpu.memory_space<vmem>>) attributes {dimension_semantics = [#tpu.dimension_semantics<parallel>, #tpu.dimension_semantics<parallel>], iteration_bounds = array<i64: 2, 1>, scalar_prefetch = 0 : i64, scratch_operands = 0 : i64, tpu.core_type = #tpu.core_type<tc>, window_params = [{transform_indices = @transform_0, window_bounds = array<i64: 1, 4, 16>}, {pipeline_mode = #tpu.pipeline_mode<synchronous>, transform_indices = @transform_1, window_bounds = array<i64: 6, 12>}, {pipeline_mode = #tpu.pipeline_mode<synchronous>, transform_indices = @transform_2, window_bounds = array<i64: 6, 1>}, {transform_indices = @transform_3, window_bounds = array<i64: 1, 6, 12>}]} {
    %c0 = arith.constant 0 : index
    %c0_0 = arith.constant 0 : index
    %c0_1 = arith.constant 0 : index
    %0 = vector.load %arg2[%c0, %c0_0, %c0_1] : memref<1x4x16xf32, #tpu.memory_space<vmem>>, vector<1x4x16xf32>
    %1 = vector.shape_cast %0 : vector<1x4x16xf32> to vector<4x16xf32>
    %c0_2 = arith.constant 0 : index
    %c0_3 = arith.constant 0 : index
    %2 = vector.load %arg3[%c0_2, %c0_3] : memref<6x12xf32, #tpu.memory_space<vmem>>, vector<6x12xf32>
    %c0_4 = arith.constant 0 : index
    %c0_5 = arith.constant 0 : index
    %3 = vector.load %arg4[%c0_4, %c0_5] : memref<6x1xf32, #tpu.memory_space<vmem>>, vector<6x1xf32>
    %4 = vector.shape_cast %3 : vector<6x1xf32> to vector<6x1xf32>
    %5 = vector.broadcast %4 : vector<6x1xf32> to vector<6x12xf32>
    %6 = vector.extract_strided_slice %1 {offsets = [0, 0], sizes = [4, 12], strides = [1, 1]} : vector<4x16xf32> to vector<4x12xf32>
    %7 = vector.extract_strided_slice %2 {offsets = [0, 0], sizes = [6, 1], strides = [1, 1]} : vector<6x12xf32> to vector<6x1xf32>
    %8 = vector.extract_strided_slice %6 {offsets = [0, 0], sizes = [1, 12], strides = [1, 1]} : vector<4x12xf32> to vector<1x12xf32>
    %9 = vector.broadcast %7 : vector<6x1xf32> to vector<6x12xf32>
    %10 = vector.broadcast %8 : vector<1x12xf32> to vector<6x12xf32>
    %11 = arith.mulf %9, %10 : vector<6x12xf32>
    %12 = arith.addf %5, %11 : vector<6x12xf32>
    %13 = vector.extract_strided_slice %2 {offsets = [0, 1], sizes = [6, 1], strides = [1, 1]} : vector<6x12xf32> to vector<6x1xf32>
    %14 = vector.extract_strided_slice %6 {offsets = [1, 0], sizes = [1, 12], strides = [1, 1]} : vector<4x12xf32> to vector<1x12xf32>
    %15 = vector.broadcast %13 : vector<6x1xf32> to vector<6x12xf32>
    %16 = vector.broadcast %14 : vector<1x12xf32> to vector<6x12xf32>
    %17 = arith.mulf %15, %16 : vector<6x12xf32>
    %18 = arith.addf %12, %17 : vector<6x12xf32>
    %19 = vector.extract_strided_slice %2 {offsets = [0, 2], sizes = [6, 1], strides = [1, 1]} : vector<6x12xf32> to vector<6x1xf32>
    %20 = vector.extract_strided_slice %6 {offsets = [2, 0], sizes = [1, 12], strides = [1, 1]} : vector<4x12xf32> to vector<1x12xf32>
    %21 = vector.broadcast %19 : vector<6x1xf32> to vector<6x12xf32>
    %22 = vector.broadcast %20 : vector<1x12xf32> to vector<6x12xf32>
    %23 = arith.mulf %21, %22 : vector<6x12xf32>
    %24 = arith.addf %18, %23 : vector<6x12xf32>
    %25 = vector.extract_strided_slice %2 {offsets = [0, 3], sizes = [6, 1], strides = [1, 1]} : vector<6x12xf32> to vector<6x1xf32>
    %26 = vector.extract_strided_slice %6 {offsets = [3, 0], sizes = [1, 12], strides = [1, 1]} : vector<4x12xf32> to vector<1x12xf32>
    %27 = vector.broadcast %25 : vector<6x1xf32> to vector<6x12xf32>
    %28 = vector.broadcast %26 : vector<1x12xf32> to vector<6x12xf32>
    %29 = arith.mulf %27, %28 : vector<6x12xf32>
    %30 = arith.addf %24, %29 : vector<6x12xf32>
    %31 = vector.extract_strided_slice %1 {offsets = [0, 2], sizes = [4, 12], strides = [1, 1]} : vector<4x16xf32> to vector<4x12xf32>
    %32 = vector.extract_strided_slice %2 {offsets = [0, 4], sizes = [6, 1], strides = [1, 1]} : vector<6x12xf32> to vector<6x1xf32>
    %33 = vector.extract_strided_slice %31 {offsets = [0, 0], sizes = [1, 12], strides = [1, 1]} : vector<4x12xf32> to vector<1x12xf32>
    %34 = vector.broadcast %32 : vector<6x1xf32> to vector<6x12xf32>
    %35 = vector.broadcast %33 : vector<1x12xf32> to vector<6x12xf32>
    %36 = arith.mulf %34, %35 : vector<6x12xf32>
    %37 = arith.addf %30, %36 : vector<6x12xf32>
    %38 = vector.extract_strided_slice %2 {offsets = [0, 5], sizes = [6, 1], strides = [1, 1]} : vector<6x12xf32> to vector<6x1xf32>
    %39 = vector.extract_strided_slice %31 {offsets = [1, 0], sizes = [1, 12], strides = [1, 1]} : vector<4x12xf32> to vector<1x12xf32>
    %40 = vector.broadcast %38 : vector<6x1xf32> to vector<6x12xf32>
    %41 = vector.broadcast %39 : vector<1x12xf32> to vector<6x12xf32>
    %42 = arith.mulf %40, %41 : vector<6x12xf32>
    %43 = arith.addf %37, %42 : vector<6x12xf32>
    %44 = vector.extract_strided_slice %2 {offsets = [0, 6], sizes = [6, 1], strides = [1, 1]} : vector<6x12xf32> to vector<6x1xf32>
    %45 = vector.extract_strided_slice %31 {offsets = [2, 0], sizes = [1, 12], strides = [1, 1]} : vector<4x12xf32> to vector<1x12xf32>
    %46 = vector.broadcast %44 : vector<6x1xf32> to vector<6x12xf32>
    %47 = vector.broadcast %45 : vector<1x12xf32> to vector<6x12xf32>
    %48 = arith.mulf %46, %47 : vector<6x12xf32>
    %49 = arith.addf %43, %48 : vector<6x12xf32>
    %50 = vector.extract_strided_slice %2 {offsets = [0, 7], sizes = [6, 1], strides = [1, 1]} : vector<6x12xf32> to vector<6x1xf32>
    %51 = vector.extract_strided_slice %31 {offsets = [3, 0], sizes = [1, 12], strides = [1, 1]} : vector<4x12xf32> to vector<1x12xf32>
    %52 = vector.broadcast %50 : vector<6x1xf32> to vector<6x12xf32>
    %53 = vector.broadcast %51 : vector<1x12xf32> to vector<6x12xf32>
    %54 = arith.mulf %52, %53 : vector<6x12xf32>
    %55 = arith.addf %49, %54 : vector<6x12xf32>
    %56 = vector.extract_strided_slice %1 {offsets = [0, 4], sizes = [4, 12], strides = [1, 1]} : vector<4x16xf32> to vector<4x12xf32>
    %57 = vector.extract_strided_slice %2 {offsets = [0, 8], sizes = [6, 1], strides = [1, 1]} : vector<6x12xf32> to vector<6x1xf32>
    %58 = vector.extract_strided_slice %56 {offsets = [0, 0], sizes = [1, 12], strides = [1, 1]} : vector<4x12xf32> to vector<1x12xf32>
    %59 = vector.broadcast %57 : vector<6x1xf32> to vector<6x12xf32>
    %60 = vector.broadcast %58 : vector<1x12xf32> to vector<6x12xf32>
    %61 = arith.mulf %59, %60 : vector<6x12xf32>
    %62 = arith.addf %55, %61 : vector<6x12xf32>
    %63 = vector.extract_strided_slice %2 {offsets = [0, 9], sizes = [6, 1], strides = [1, 1]} : vector<6x12xf32> to vector<6x1xf32>
    %64 = vector.extract_strided_slice %56 {offsets = [1, 0], sizes = [1, 12], strides = [1, 1]} : vector<4x12xf32> to vector<1x12xf32>
    %65 = vector.broadcast %63 : vector<6x1xf32> to vector<6x12xf32>
    %66 = vector.broadcast %64 : vector<1x12xf32> to vector<6x12xf32>
    %67 = arith.mulf %65, %66 : vector<6x12xf32>
    %68 = arith.addf %62, %67 : vector<6x12xf32>
    %69 = vector.extract_strided_slice %2 {offsets = [0, 10], sizes = [6, 1], strides = [1, 1]} : vector<6x12xf32> to vector<6x1xf32>
    %70 = vector.extract_strided_slice %56 {offsets = [2, 0], sizes = [1, 12], strides = [1, 1]} : vector<4x12xf32> to vector<1x12xf32>
    %71 = vector.broadcast %69 : vector<6x1xf32> to vector<6x12xf32>
    %72 = vector.broadcast %70 : vector<1x12xf32> to vector<6x12xf32>
    %73 = arith.mulf %71, %72 : vector<6x12xf32>
    %74 = arith.addf %68, %73 : vector<6x12xf32>
    %75 = vector.extract_strided_slice %2 {offsets = [0, 11], sizes = [6, 1], strides = [1, 1]} : vector<6x12xf32> to vector<6x1xf32>
    %76 = vector.extract_strided_slice %56 {offsets = [3, 0], sizes = [1, 12], strides = [1, 1]} : vector<4x12xf32> to vector<1x12xf32>
    %77 = vector.broadcast %75 : vector<6x1xf32> to vector<6x12xf32>
    %78 = vector.broadcast %76 : vector<1x12xf32> to vector<6x12xf32>
    %79 = arith.mulf %77, %78 : vector<6x12xf32>
    %80 = arith.addf %74, %79 : vector<6x12xf32>
    %c0_6 = arith.constant 0 : index
    %c0_7 = arith.constant 0 : index
    %c0_8 = arith.constant 0 : index
    %81 = vector.load %arg5[%c0_6, %c0_7, %c0_8] : memref<1x6x12xf32, #tpu.memory_space<vmem>>, vector<1x6x12xf32>
    %82 = vector.shape_cast %81 : vector<1x6x12xf32> to vector<6x12xf32>
    %83 = vector.shape_cast %80 : vector<6x12xf32> to vector<1x6x12xf32>
    tpu.vector_store %arg5[%c0_6, %c0_7, %c0_8], %83 {strides = array<i32>} : memref<1x6x12xf32, #tpu.memory_space<vmem>>, vector<1x6x12xf32>,
    return
  }
  func.func @transform_0(%arg0: i32, %arg1: i32) -> (i32, i32, i32) {
    %c0_i32 = arith.constant 0 : i32
    %c0_i32_0 = arith.constant 0 : i32
    return %arg0, %c0_i32, %arg1 : i32, i32, i32
  }
  func.func @transform_1(%arg0: i32, %arg1: i32) -> (i32, i32) {
    %c0_i32 = arith.constant 0 : i32
    %c0_i32_0 = arith.constant 0 : i32
    %c0_i32_1 = arith.constant 0 : i32
    return %c0_i32, %c0_i32_0 : i32, i32
  }
  func.func @transform_2(%arg0: i32, %arg1: i32) -> (i32, i32) {
    %c0_i32 = arith.constant 0 : i32
    %c0_i32_0 = arith.constant 0 : i32
    %c0_i32_1 = arith.constant 0 : i32
    return %c0_i32, %c0_i32_0 : i32, i32
  }
  func.func @transform_3(%arg0: i32, %arg1: i32) -> (i32, i32, i32) {
    %c0_i32 = arith.constant 0 : i32
    %c0_i32_0 = arith.constant 0 : i32
    return %arg0, %c0_i32, %arg1 : i32, i32, i32
  }
}

</mosaic_0001>

<llo_original>
// kernel: tpu_custom_call.1
$region0: #{tpu_custom_call.1}
  #allocation0 [shape = 'u32[]', space=smem, size = 0x4, offset = 0x4, fixed_abs, tag = 'smem constant byte address 0x4 - core index']
  #allocation1 [shape = 'u32[144,128]{1,0:T(1,128)}', space=vmem, size = 0x12000, scoped, tag = 'internal scratch']
  %s0 = inlined_call_operand.vmem [shape: f32[2,4,16], index: 0, kind: input, shape index: {}]
  %s1 = inlined_call_operand.hbm [shape: f32[6,12], index: 1, kind: input, shape index: {}]
  %s2 = inlined_call_operand.vmem [shape: f32[6,1], index: 2, kind: input, shape index: {}]
  %s3 = inlined_call_operand.vmem [shape: f32[2,6,12], index: 3, kind: output, shape index: {}]
  %s4 = sld [smem:[#allocation0]]
  $region49: #{tpu_custom_call.1} parent=0
    _
  %s6 = ssub.s32 1, %s4
  %s7 = scalar_select 0, %s6, %s4
  $region1: #{tpu_custom_call.1} parent=0
    #allocation2 [shape = 'u8[4096]{0}', space=vmem, size = 0x1000, scoped, tag = 'input window, operand 1, single buffered']
    #allocation3 [shape = 's32[2]{0}', space=sflag, size = 0x8, scoped, tag = 'scoped memory for tpu_custom_call.1']
    %8 = vsyncpa [#allocation3], 0
    loop: start=0, step=1, limit=4
    $region2: #{tpu_custom_call.1} parent=1 // loop_pre_header
      _
    $region3: #{tpu_custom_call.1} parent=1 // loop_header
      %s10 = sphi 0, %s14
      %p11 = scmp.ge.s32.totalorder %s10, 4
      %s17 = sphi 0, %s29
      %s18 = sphi 0, %s25
      %s19 = sphi 0, %s17
      %s20 = sphi 0, %s18
      %s21 = sphi 0, %s19
      %s22 = sphi 0, %s20
      %s34 = sphi 0, %s36
      %s37 = sphi 0, %s34
      %s38 = sphi 0, %s37
      %s54 = sphi 0, %s38
      %s58 = sphi 0, %s58
      %s60 = sphi 0, %s58
      %s61 = sphi 0, %s60
      %s75 = sphi 0, %s61
      %s79 = sphi 0, %s79
      %s81 = sphi 0, %s79
      %s82 = sphi 0, %s81
      %s96 = sphi 0, %s82
      %s104 = sphi 0, %s106
      %s107 = sphi 0, %s104
      %s108 = sphi 0, %s107
      %s124 = sphi 0, %s108
    $region4: #{tpu_custom_call.1} parent=1 // loop_header_branch
      %13 = sbr.rel (%p11) target = $region8
    $region5: #{tpu_custom_call.1} parent=1 // loop_body
      %s15 = ssub.s32 %s10, 1
      %s16 = ssub.s32 %s10, 2
      %s23 = sadd.s32 1, %s18
      %p24 = scmp.ge.s32.totalorder %s23, 1
      %s25 = scalar_select %p24, 0, %s23
      %s26 = sadd.s32 1, %s17
      %s27 = scalar_select %p24, %s26, %s17
      %p28 = scmp.ge.s32.totalorder %s27, 2
      %s29 = scalar_select %p28, 0, %s27
      %s30 = ssub.s32 %s17, %s29
      %s31 = ssub.s32 %s18, %s25
      %s32 = sor.u32 %s30, %s31
      %p33 = scmp.eq.s32.totalorder %s32, 0
      %s35 = sadd.s32 %s34, 1
      %s36 = scalar_select %p33, %s34, %s35
      %p39 = pneg %p33
      %p40 = scmp.eq.s32.totalorder %s10, 1
      %p41 = por %p39, %p40
      %p42 = scmp.ne.s32.totalorder %s34, %s37
      %p43 = scmp.eq.s32.totalorder %s10, 0
      %p44 = por %p42, %p43
      %p45 = scmp.ne.s32.totalorder %s34, %s37
      %p46 = scmp.eq.s32.totalorder %s15, 1
      %p47 = por %p45, %p46
      %p48 = scmp.ne.s32.totalorder %s37, %s38
      %p49 = scmp.eq.s32.totalorder %s15, 0
      %p50 = por %p48, %p49
      %p51 = scmp.ne.s32.totalorder %s37, %s38
      %p52 = scmp.eq.s32.totalorder %s16, 1
      %p53 = por %p51, %p52
      %p55 = scmp.ne.s32.totalorder %s38, %s54
      %p56 = scmp.eq.s32.totalorder %s16, 0
      %p57 = por %p55, %p56
      %s59 = sadd.s32 %s58, 1
      %p62 = scmp.eq.s32.totalorder %s10, 1
      %p63 = scmp.ne.s32.totalorder %s58, %s60
      %p64 = scmp.eq.s32.totalorder %s10, 0
      %p65 = por %p63, %p64
      %p66 = scmp.ne.s32.totalorder %s58, %s60
      %p67 = scmp.eq.s32.totalorder %s15, 1
      %p68 = por %p66, %p67
      %p69 = scmp.ne.s32.totalorder %s60, %s61
      %p70 = scmp.eq.s32.totalorder %s15, 0
      %p71 = por %p69, %p70
      %p72 = scmp.ne.s32.totalorder %s60, %s61
      %p73 = scmp.eq.s32.totalorder %s16, 1
      %p74 = por %p72, %p73
      %p76 = scmp.ne.s32.totalorder %s61, %s75
      %p77 = scmp.eq.s32.totalorder %s16, 0
      %p78 = por %p76, %p77
      %s80 = sadd.s32 %s79, 1
      %p83 = scmp.eq.s32.totalorder %s10, 1
      %p84 = scmp.ne.s32.totalorder %s79, %s81
      %p85 = scmp.eq.s32.totalorder %s10, 0
      %p86 = por %p84, %p85
      %p87 = scmp.ne.s32.totalorder %s79, %s81
      %p88 = scmp.eq.s32.totalorder %s15, 1
      %p89 = por %p87, %p88
      %p90 = scmp.ne.s32.totalorder %s81, %s82
      %p91 = scmp.eq.s32.totalorder %s15, 0
      %p92 = por %p90, %p91
      %p93 = scmp.ne.s32.totalorder %s81, %s82
      %p94 = scmp.eq.s32.totalorder %s16, 1
      %p95 = por %p93, %p94
      %p97 = scmp.ne.s32.totalorder %s82, %s96
      %p98 = scmp.eq.s32.totalorder %s16, 0
      %p99 = por %p97, %p98
      %s100 = ssub.s32 %s17, %s29
      %s101 = ssub.s32 %s18, %s25
      %s102 = sor.u32 %s100, %s101
      %p103 = scmp.eq.s32.totalorder %s102, 0
      %s105 = sadd.s32 %s104, 1
      %s106 = scalar_select %p103, %s104, %s105
      %p109 = pneg %p103
      %p110 = scmp.eq.s32.totalorder %s10, 1
      %p111 = por %p109, %p110
      %p112 = scmp.ne.s32.totalorder %s104, %s107
      %p113 = scmp.eq.s32.totalorder %s10, 0
      %p114 = por %p112, %p113
      %p115 = scmp.ne.s32.totalorder %s104, %s107
      %p116 = scmp.eq.s32.totalorder %s15, 1
      %p117 = por %p115, %p116
      %p118 = scmp.ne.s32.totalorder %s107, %s108
      %p119 = scmp.eq.s32.totalorder %s15, 0
      %p120 = por %p118, %p119
      %p121 = scmp.ne.s32.totalorder %s107, %s108
      %p122 = scmp.eq.s32.totalorder %s16, 1
      %p123 = por %p121, %p122
      %p125 = scmp.ne.s32.totalorder %s108, %s124
      %p126 = scmp.eq.s32.totalorder %s16, 0
      %p127 = por %p125, %p126
      %p128 = scmp.le.s32.totalorder 1, %s10
      %p129 = scmp.lt.s32.totalorder %s10, 3
      %p130 = pnand %p128, %p129
      %p131 = pneg %p130
      // Predicated region
      $region9: #{tpu_custom_call.1} parent=5 // pred_check
        _
      $region10: #{tpu_custom_call.1} parent=5 // pred_check_branch
        %133 = sbr.rel (%p130) target = $region12
      $region11: #{tpu_custom_call.1} parent=5 // pred_region
        %s134 = ssub.s32 %s10, 1
        // Predicated region
        $region13: #{tpu_custom_call.1} parent=11 // pred_check
          %p135 = pneg %p71
        $region14: #{tpu_custom_call.1} parent=11 // pred_check_branch
          %137 = sbr.rel (%p135) target = $region16
        $region15: #{tpu_custom_call.1} parent=11 // pred_region
          %s139 = ssub.s32 128, 128
          %140 = vsyncadd [#allocation3], %s139
          %s142 = sshll.u32 [#allocation2], 4
          %s143 = int_to_ptr.vmem [resolvable:$true] %s142
          %145 = dma.hbm_to_vmem [thread:$0]  %s1, 128, %s143, [#allocation3]
        $region16: #{tpu_custom_call.1} parent=11 // pred_fallthru
          _
        // Predicated region
        $region17: #{tpu_custom_call.1} parent=11 // pred_check
          %p146 = pneg %p92
        $region18: #{tpu_custom_call.1} parent=11 // pred_check_branch
          %148 = sbr.rel (%p146) target = $region20
        $region19: #{tpu_custom_call.1} parent=11 // pred_region
          _
        $region20: #{tpu_custom_call.1} parent=11 // pred_fallthru
          _
      $region12: #{tpu_custom_call.1} parent=5 // pred_fallthru
        _
      %p149 = scmp.lt.s32.totalorder %s10, 2
      // Predicated region
      $region21: #{tpu_custom_call.1} parent=5 // pred_check
        %p150 = pneg %p149
      $region22: #{tpu_custom_call.1} parent=5 // pred_check_branch
        %152 = sbr.rel (%p150) target = $region24
      $region23: #{tpu_custom_call.1} parent=5 // pred_region
        // Predicated region
        $region25: #{tpu_custom_call.1} parent=23 // pred_check
          %p153 = pneg %p44
        $region26: #{tpu_custom_call.1} parent=23 // pred_check_branch
          %155 = sbr.rel (%p153) target = $region28
        $region27: #{tpu_custom_call.1} parent=23 // pred_region
          %p156 = scmp.lt.s32.totalorder %s17, 1
          %s157 = scalar_select %p156, %s17, 1
          %p158 = scmp.lt.s32.totalorder %s18, 0
          %s159 = scalar_select %p158, %s18, 0
          %s160 = sadd.s32 %s159, %s157
          %s161 = smul.addr %s160, 4
          %s162 = scalar_lea.vmem %s0, %s161
        $region28: #{tpu_custom_call.1} parent=23 // pred_fallthru
          _
      $region24: #{tpu_custom_call.1} parent=5 // pred_fallthru
        _
      %p163 = scmp.le.s32.totalorder 1, %s10
      %p164 = scmp.lt.s32.totalorder %s10, 3
      %p165 = pnand %p163, %p164
      %p166 = pneg %p165
      // Predicated region
      $region29: #{tpu_custom_call.1} parent=5 // pred_check
        _
      $region30: #{tpu_custom_call.1} parent=5 // pred_check_branch
        %168 = sbr.rel (%p165) target = $region32
      $region31: #{tpu_custom_call.1} parent=5 // pred_region
        %s169 = ssub.s32 %s10, 1
        // Predicated region
        $region33: #{tpu_custom_call.1} parent=31 // pred_check
          %p170 = pneg %p71
        $region34: #{tpu_custom_call.1} parent=31 // pred_check_branch
          %172 = sbr.rel (%p170) target = $region36
        $region35: #{tpu_custom_call.1} parent=31 // pred_region
          %173 = dma.done [#allocation3], 128
        $region36: #{tpu_custom_call.1} parent=31 // pred_fallthru
          _
        %p174 = scmp.lt.s32.totalorder %s19, 1
        %s175 = scalar_select %p174, %s19, 1
        %p176 = scmp.lt.s32.totalorder %s20, 0
        %s177 = scalar_select %p176, %s20, 0
        %s178 = sadd.s32 %s177, %s175
        %s179 = smul.addr %s178, 4
        %s180 = scalar_lea.vmem %s0, %s179
        %p181 = pneg %p50
        %p182 = pneg %p47
        %p183 = pneg %p71
        %p184 = pneg %p68
        %p185 = pneg %p92
        %p186 = pneg %p89
        %p187 = pneg %p120
        %p188 = pneg %p117
        %p189 = scmp.lt.s32.totalorder %s19, 1
        %s190 = scalar_select %p189, %s19, 1
        %p191 = scmp.lt.s32.totalorder %s20, 0
        %s192 = scalar_select %p191, %s20, 0
        %s193 = sadd.s32 %s192, %s190
        %s194 = smul.addr %s193, 8
        %s195 = scalar_lea.vmem %s3, %s194
        %p196 = scmp.lt.s32.totalorder %s19, 1
        %s197 = scalar_select %p196, %s19, 1
        %p198 = scmp.lt.s32.totalorder %s20, 0
        %s199 = scalar_select %p198, %s20, 0
        %s200 = sadd.s32 %s199, %s197
        %s201 = smul.addr %s200, 4
        %s202 = scalar_lea.vmem %s0, %s201
        %p203 = scmp.lt.s32.totalorder %s19, 1
        %s204 = scalar_select %p203, %s19, 1
        %p205 = scmp.lt.s32.totalorder %s20, 0
        %s206 = scalar_select %p205, %s20, 0
        %s207 = sadd.s32 %s206, %s204
        %s208 = smul.addr %s207, 8
        %s209 = scalar_lea.vmem %s3, %s208
        %v210 = vld [vmem:[%s202] sm:$0xf]
        %v211 = vld [vmem:[#allocation2] sm:$0x3f]
        %v212 = vld [vmem:[%s2] sm:$0x3f]
        %214 = vset.pattern.permute.xlu0 0
        %215 = vperm.xlu0 %214, %v212
        %v216 = vpop.permute.xlu0 %215
        %219 = vset.pattern.permute.xlu0 0
        %220 = vperm.xlu0 %219, %v211
        %v221 = vpop.permute.xlu0 %220
        %v223 = vlaneseq
        %v224 = vshrl.u32 %v223, 7
        %v225 = vsub.s32 0, %v224
        %v226 = vrot.slane %v210, %v225
        %v227 = vmul.f32 %v221, %v226
        %v228 = vadd.f32 %v216, %v227
        %229 = vset.pattern.permute.xlu0 1
        %230 = vperm.xlu0 %229, %v211
        %v231 = vpop.permute.xlu0 %230
        %v233 = vlaneseq
        %v234 = vshrl.u32 %v233, 7
        %v235 = vsub.s32 1, %v234
        %v236 = vrot.slane %v210, %v235
        %v237 = vmul.f32 %v231, %v236
        %v238 = vadd.f32 %v228, %v237
        %239 = vset.pattern.permute.xlu0 2
        %240 = vperm.xlu0 %239, %v211
        %v241 = vpop.permute.xlu0 %240
        %v243 = vlaneseq
        %v244 = vshrl.u32 %v243, 7
        %v245 = vsub.s32 2, %v244
        %v246 = vrot.slane %v210, %v245
        %v247 = vmul.f32 %v241, %v246
        %v248 = vadd.f32 %v238, %v247
        %249 = vset.pattern.permute.xlu0 3
        %250 = vperm.xlu0 %249, %v211
        %v251 = vpop.permute.xlu0 %250
        %v253 = vlaneseq
        %v254 = vshrl.u32 %v253, 7
        %v255 = vsub.s32 3, %v254
        %v256 = vrot.slane %v210, %v255
        %v257 = vmul.f32 %v251, %v256
        %v258 = vadd.f32 %v248, %v257
        %259 = vset.pattern.permute.xlu0 4
        %260 = vperm.xlu0 %259, %v211
        %v261 = vpop.permute.xlu0 %260
        %v263 = vmul.f32 %v261, %v226
        %265 = vrot.lane.b32.xlu0 %v263, 126
        %v266 = vpop.permute.xlu0 %265
        %v268 = vadd.f32 %v258, %v266
        %269 = vset.pattern.permute.xlu0 5
        %270 = vperm.xlu0 %269, %v211
        %v271 = vpop.permute.xlu0 %270
        %v273 = vmul.f32 %v271, %v236
        %275 = vrot.lane.b32.xlu0 %v273, 126
        %v276 = vpop.permute.xlu0 %275
        %v278 = vadd.f32 %v268, %v276
        %279 = vset.pattern.permute.xlu0 6
        %280 = vperm.xlu0 %279, %v211
        %v281 = vpop.permute.xlu0 %280
        %v283 = vmul.f32 %v281, %v246
        %285 = vrot.lane.b32.xlu0 %v283, 126
        %v286 = vpop.permute.xlu0 %285
        %v288 = vadd.f32 %v278, %v286
        %289 = vset.pattern.permute.xlu0 7
        %290 = vperm.xlu0 %289, %v211
        %v291 = vpop.permute.xlu0 %290
        %v293 = vmul.f32 %v291, %v256
        %295 = vrot.lane.b32.xlu0 %v293, 126
        %v296 = vpop.permute.xlu0 %295
        %v298 = vadd.f32 %v288, %v296
        %299 = vset.pattern.permute.xlu0 8
        %300 = vperm.xlu0 %299, %v211
        %v301 = vpop.permute.xlu0 %300
        %v303 = vmul.f32 %v301, %v226
        %305 = vrot.lane.b32.xlu0 %v303, 124
        %v306 = vpop.permute.xlu0 %305
        %v308 = vadd.f32 %v298, %v306
        %309 = vset.pattern.permute.xlu0 9
        %310 = vperm.xlu0 %309, %v211
        %v311 = vpop.permute.xlu0 %310
        %v313 = vmul.f32 %v311, %v236
        %315 = vrot.lane.b32.xlu0 %v313, 124
        %v316 = vpop.permute.xlu0 %315
        %v318 = vadd.f32 %v308, %v316
        %319 = vset.pattern.permute.xlu0 10
        %320 = vperm.xlu0 %319, %v211
        %v321 = vpop.permute.xlu0 %320
        %v323 = vmul.f32 %v321, %v246
        %325 = vrot.lane.b32.xlu0 %v323, 124
        %v326 = vpop.permute.xlu0 %325
        %v328 = vadd.f32 %v318, %v326
        %329 = vset.pattern.permute.xlu0 11
        %330 = vperm.xlu0 %329, %v211
        %v331 = vpop.permute.xlu0 %330
        %v333 = vmul.f32 %v331, %v256
        %335 = vrot.lane.b32.xlu0 %v333, 124
        %v336 = vpop.permute.xlu0 %335
        %v338 = vadd.f32 %v328, %v336
        %vm339 = vcmask 95232
        %340 = vst.msk [vmem:[%s209] sm:$0x3f] %vm339, %v338
        %p341 = scmp.lt.s32.totalorder %s19, 1
        %s342 = scalar_select %p341, %s19, 1
        %p343 = scmp.lt.s32.totalorder %s20, 0
        %s344 = scalar_select %p343, %s20, 0
        %s345 = sadd.s32 %s344, %s342
        %s346 = smul.addr %s345, 8
        %s347 = scalar_lea.vmem %s3, %s346
        // Predicated region
        $region37: #{tpu_custom_call.1} parent=31 // pred_check
          %p348 = pneg %p117
        $region38: #{tpu_custom_call.1} parent=31 // pred_check_branch
          %350 = sbr.rel (%p348) target = $region40
        $region39: #{tpu_custom_call.1} parent=31 // pred_region
          _
        $region40: #{tpu_custom_call.1} parent=31 // pred_fallthru
          _
      $region32: #{tpu_custom_call.1} parent=5 // pred_fallthru
        _
      %p351 = scmp.le.s32.totalorder 2, %s10
      // Predicated region
      $region41: #{tpu_custom_call.1} parent=5 // pred_check
        %p352 = pneg %p351
      $region42: #{tpu_custom_call.1} parent=5 // pred_check_branch
        %354 = sbr.rel (%p352) target = $region44
      $region43: #{tpu_custom_call.1} parent=5 // pred_region
        %s355 = ssub.s32 %s10, 2
        // Predicated region
        $region45: #{tpu_custom_call.1} parent=43 // pred_check
          %p356 = pneg %p123
        $region46: #{tpu_custom_call.1} parent=43 // pred_check_branch
          %358 = sbr.rel (%p356) target = $region48
        $region47: #{tpu_custom_call.1} parent=43 // pred_region
          %p359 = scmp.lt.s32.totalorder %s21, 1
          %s360 = scalar_select %p359, %s21, 1
          %p361 = scmp.lt.s32.totalorder %s22, 0
          %s362 = scalar_select %p361, %s22, 0
          %s363 = sadd.s32 %s362, %s360
          %s364 = smul.addr %s363, 8
          %s365 = scalar_lea.vmem %s3, %s364
        $region48: #{tpu_custom_call.1} parent=43 // pred_fallthru
          _
      $region44: #{tpu_custom_call.1} parent=5 // pred_fallthru
        _
    $region6: #{tpu_custom_call.1} parent=1 // loop_footer
      %s14 = sadd.s32 1, %s10
    $region7: #{tpu_custom_call.1} parent=1 // loop_footer_branch
      %9 = sbr.rel target = $region3
    $region8: #{tpu_custom_call.1} parent=1 // loop_exit
      _
    %366 = vsyncpa [#allocation3], 1
    %s367 = scalar_lea.sflag [#allocation3], 1
    %368 = vsyncpa %s367, 1

</llo_original>
